<compile_context>
chip_gen: v7x
topology: tpu7x:2x2x1
jax: 0.10.0
libtpu: 0.0.40
codegen_flags: <defaults>
</compile_context>

<pallas_src>
import math
from functools import partial

import jax
import jax.numpy as jnp
from jax.experimental import pallas as pl
from jax.experimental.pallas import tpu as pltpu


def _drop_path_kernel(x_ref, scale_ref, o_ref):
    # x_ref:     (TR, TN)  activation tile
    # scale_ref: (TR, 1)   per-row f32 scale = keep_mask / keep_prob
    # out = x * scale  (broadcast over lanes), cast back to the output dtype.
    o_ref[...] = (x_ref[...] * scale_ref[...]).astype(o_ref.dtype)


def _device_budget_bytes() -> int:
    """Per-pipelined-buffer VMEM budget, scaled to the HBM speed of the chip."""
    kind = ""
    try:
        kind = jax.devices()[0].device_kind.lower()
    except Exception:  # pragma: no cover - defensive
        pass
    if "v7" in kind:
        return 7 * 1024 * 1024   # ~3.2 TB/s HBM: big tiles amortize per-step overhead
    if "v6" in kind:
        return 6 * 1024 * 1024   # ~1.4 TB/s
    return 3 * 1024 * 1024       # v5e / unknown: 2-4 MiB already ~roofline


def _vmem_limit_bytes(budget: int) -> int:
    # 2 double-buffered streams (in + out) plus scale block; keep >=32 MiB so the
    # v5e 16 MiB scoped default never bites, and <=48 MiB so v7x (64 MiB) is safe.
    return max(32 * 1024 * 1024, min(48 * 1024 * 1024, 6 * budget))


def _choose_tiles(rows: int, cols_p: int, itemsize: int, budget: int):
    """Pick (row tile, lane tile): lane tile is a multiple of 128 sized to the
    per-buffer budget, capped so wide activations get >= 8 lane grid steps."""
    tr = rows if rows <= 256 else 256
    tn = budget // max(tr * itemsize, 1)
    tn = max((tn // 128) * 128, 128)
    tn = min(tn, cols_p)
    # Guarantee enough grid steps for pipelining + v7x megacore on wide slabs,
    # but never shrink a tile below 512 lanes (per-step overhead would dominate).
    min_steps = 8
    if cols_p >= min_steps * 512:
        cap = max(512, (cols_p // min_steps) // 128 * 128)
        tn = min(tn, cap)
    return tr, tn


def _drop_path_impl(x, key, drop_prob: float, training: bool):
    if drop_prob == 0.0 or not training:
        return x
    if drop_prob >= 1.0:
        # keep_prob == 0 would give 0 * inf = NaN; dropping every path is the
        # only sensible semantics here.
        return jnp.zeros_like(x)

    keep_prob = 1.0 - float(drop_prob)
    orig_shape = x.shape
    orig_dtype = x.dtype
    B = x.shape[0]

    # Per-sample Bernoulli(keep_prob) mask via the floor(keep_prob + U) trick,
    # computed in f32 with 1/keep_prob folded in (bf16-safe, zero extra cost).
    rnd = jax.random.uniform(key, (B, 1), dtype=jnp.float32)
    scale = jnp.floor(keep_prob + rnd) * (1.0 / keep_prob)          # (B, 1) f32

    x2d = x.reshape(B, -1)                                          # (B, C*H*W)
    N = x2d.shape[1]
    itemsize = jnp.dtype(orig_dtype).itemsize
    sub = max(8, 32 // max(itemsize, 1))       # sublanes/vreg: 8 f32, 16 bf16, ...

    # Sublane packing: split each sample row into S consecutive sub-rows so the
    # block occupies full sublanes.  Full occupancy needs S = sub / gcd(B, sub);
    # fall back through smaller powers of two if the row length doesn't divide.
    S = 1
    cand = sub // math.gcd(B, sub)
    while cand > 1:
        if N % cand == 0:
            S = cand
            break
        cand //= 2
    rows, cols = B * S, N // S
    if S > 1:
        x2d = x2d.reshape(rows, cols)          # bit-layout-preserving (free)
        scale = jnp.repeat(scale, S, axis=0)   # (rows, 1)

    # Lane padding only up to the next multiple of 128 (rare fallback); the
    # grid itself uses cdiv + ragged last block, so no pad-to-TN round trip.
    pad = (-cols) % 128
    if pad:
        x2d = jnp.pad(x2d, ((0, 0), (0, pad)))
    cols_p = cols + pad

    budget = _device_budget_bytes()
    tr, tn = _choose_tiles(rows, cols_p, itemsize, budget)
    grid = (pl.cdiv(rows, tr), pl.cdiv(cols_p, tn))

    out2d = pl.pallas_call(
        _drop_path_kernel,
        out_shape=jax.ShapeDtypeStruct((rows, cols_p), orig_dtype),
        grid_spec=pltpu.PrefetchScalarGridSpec(
            num_scalar_prefetch=0,
            grid=grid,
            in_specs=[
                pl.BlockSpec((tr, tn), lambda i, j: (i, j)),  # activation tiles
                pl.BlockSpec((tr, 1), lambda i, j: (i, 0)),   # per-row scale column
            ],
            out_specs=pl.BlockSpec((tr, tn), lambda i, j: (i, j)),
        ),
        compiler_params=pltpu.CompilerParams(
            dimension_semantics=("parallel", "parallel"),     # megacore-shardable
            vmem_limit_bytes=_vmem_limit_bytes(budget),
        ),
    )(x2d, scale)

    if pad:
        out2d = out2d[:, :cols]
    return out2d.reshape(orig_shape)


_drop_path_jit = jax.jit(_drop_path_impl, static_argnames=("drop_prob", "training"))


def drop_path(x, key, drop_prob: float = 0.0, training: bool = False):
    """JAX/Pallas equivalent of the PyTorch drop_path function."""
    return _drop_path_jit(x, key, drop_prob=float(drop_prob), training=bool(training))


class DropPath:
    """Stochastic depth per sample, Pallas-backed forward."""

    def __init__(self, drop_prob=None):
        self.drop_prob = drop_prob
        self.training = True

    def __call__(self, x, key):
        p = 0.0 if self.drop_prob is None else float(self.drop_prob)
        return drop_path(x, key, p, self.training)


def _reference(x, key, drop_prob):
    """Pure-JAX reference with the same mask derivation as the wrapper."""
    keep_prob = 1.0 - drop_prob
    B = x.shape[0]
    rnd = jax.random.uniform(key, (B, 1), dtype=jnp.float32)
    mask = jnp.floor(keep_prob + rnd).reshape((B,) + (1,) * (x.ndim - 1))
    scale = mask * (1.0 / keep_prob)
    return (x.astype(jnp.float32) * scale).astype(x.dtype)


if __name__ == "__main__":
    key = jax.random.PRNGKey(0)
    kx, kmask = jax.random.split(key)
    p = 0.25

    # 1) Small shape (sublane packing S=4, single tile).
    B, C, H, W = 2, 4, 16, 16
    x = jax.random.normal(kx, (B, C, H, W), dtype=jnp.float32)
    module = DropPath(drop_prob=p)
    module.training = True
    out = jax.block_until_ready(module(x, kmask))
    ref = _reference(x, kmask, p)
    assert jnp.allclose(out, ref, atol=1e-6, rtol=1e-5), "small-shape mismatch"

    # 2) Eval-mode path is identity.
    module.training = False
    out_eval = jax.block_until_ready(module(x, kmask))
    assert jnp.allclose(out_eval, x), "eval path must be identity"
    module.training = True

    # 3) drop_prob == 1.0 guard: drops everything, no NaN.
    module_full = DropPath(drop_prob=1.0)
    out_full = jax.block_until_ready(module_full(x, kmask))
    assert jnp.allclose(out_full, jnp.zeros_like(x)), "drop_prob=1 must zero out"

    # 4) Medium shape exercising the multi-step lane grid (>= 8 steps).
    Bl, Cl, Hl, Wl = 16, 64, 28, 28
    xl = jax.random.normal(kx, (Bl, Cl, Hl, Wl), dtype=jnp.float32)
    outl = jax.block_until_ready(module(xl, kmask))
    refl = _reference(xl, kmask, p)
    assert jnp.allclose(outl, refl, atol=1e-6, rtol=1e-5), "medium-shape mismatch"

    # 5) Odd shape exercising packing fallback + pad-to-128 fallback (B=3, N=315).
    xo = jax.random.normal(kx, (3, 5, 7, 9), dtype=jnp.float32)
    outo = jax.block_until_ready(module(xo, kmask))
    refo = _reference(xo, kmask, p)
    assert jnp.allclose(outo, refo, atol=1e-6, rtol=1e-5), "odd-shape mismatch"

    # 6) bf16 input exercising 16-sublane packing and the f32 scale path.
    xb = jax.random.normal(kx, (2, 4, 16, 16), dtype=jnp.bfloat16)
    outb = jax.block_until_ready(module(xb, kmask))
    refb = _reference(xb, kmask, p)
    assert jnp.allclose(outb.astype(jnp.float32), refb.astype(jnp.float32),
                        atol=1e-2, rtol=1e-2), "bf16 mismatch"

    print("KERNEL_OK")
</pallas_src>

<mosaic_0001>
module attributes {stable_mosaic.version = 11 : i64} {
  func.func @_drop_path_kernel(%arg0: i32, %arg1: i32, %arg2: memref<8x256xf32, #tpu.memory_space<vmem>>, %arg3: memref<8x1xf32, #tpu.memory_space<vmem>>, %arg4: memref<8x256xf32, #tpu.memory_space<vmem>>) attributes {dimension_semantics = [#tpu.dimension_semantics<parallel>, #tpu.dimension_semantics<parallel>], iteration_bounds = array<i64: 1, 1>, scalar_prefetch = 0 : i64, scratch_operands = 0 : i64, tpu.core_type = #tpu.core_type<tc>, window_params = [{transform_indices = @transform_0, window_bounds = array<i64: 8, 256>}, {transform_indices = @transform_1, window_bounds = array<i64: 8, 1>}, {transform_indices = @transform_2, window_bounds = array<i64: 8, 256>}]} {
    %c0 = arith.constant 0 : index
    %c0_0 = arith.constant 0 : index
    %0 = vector.load %arg2[%c0, %c0_0] : memref<8x256xf32, #tpu.memory_space<vmem>>, vector<8x256xf32>
    %c0_1 = arith.constant 0 : index
    %c0_2 = arith.constant 0 : index
    %1 = vector.load %arg3[%c0_1, %c0_2] : memref<8x1xf32, #tpu.memory_space<vmem>>, vector<8x1xf32>
    %2 = vector.broadcast %1 : vector<8x1xf32> to vector<8x256xf32>
    %3 = arith.mulf %0, %2 : vector<8x256xf32>
    %c0_3 = arith.constant 0 : index
    %c0_4 = arith.constant 0 : index
    %4 = vector.load %arg4[%c0_3, %c0_4] : memref<8x256xf32, #tpu.memory_space<vmem>>, vector<8x256xf32>
    tpu.vector_store %arg4[%c0_3, %c0_4], %3 {strides = array<i32>} : memref<8x256xf32, #tpu.memory_space<vmem>>, vector<8x256xf32>,
    return
  }
  func.func @transform_0(%arg0: i32, %arg1: i32) -> (i32, i32) {
    %c0_i32 = arith.constant 0 : i32
    return %arg0, %arg1 : i32, i32
  }
  func.func @transform_1(%arg0: i32, %arg1: i32) -> (i32, i32) {
    %c0_i32 = arith.constant 0 : i32
    %c0_i32_0 = arith.constant 0 : i32
    return %arg0, %c0_i32 : i32, i32
  }
  func.func @transform_2(%arg0: i32, %arg1: i32) -> (i32, i32) {
    %c0_i32 = arith.constant 0 : i32
    return %arg0, %arg1 : i32, i32
  }
}

</mosaic_0001>

<llo_original>
// kernel: _drop_path_impl.1
$region0: #{_drop_path_impl.1}
  #allocation0 [shape = 'u32[]', space=smem, size = 0x4, offset = 0x4, fixed_abs, tag = 'smem constant byte address 0x4 - core index']
  #allocation1 [shape = 'u32[144,128]{1,0:T(1,128)}', space=vmem, size = 0x12000, scoped, tag = 'internal scratch']
  %s0 = inlined_call_operand.vmem [shape: f32[8,256], index: 0, kind: input, shape index: {}]
  %s1 = inlined_call_operand.vmem [shape: f32[8,1], index: 1, kind: input, shape index: {}]
  %s2 = inlined_call_operand.vmem [shape: f32[8,256], index: 2, kind: output, shape index: {}]
  %s3 = sld [smem:[#allocation0]]
  $region18: #{_drop_path_impl.1} parent=0
    _
  %s5 = ssub.s32 1, %s3
  %s6 = scalar_select 0, %s5, %s3
  // Predicated region
  $region2: #{_drop_path_impl.1} parent=0 // pred_check
    _
  $region3: #{_drop_path_impl.1} parent=0 // pred_check_branch
    %8 = sbr.rel (0) target = $region5
  $region4: #{_drop_path_impl.1} parent=0 // pred_region
    _
  $region5: #{_drop_path_impl.1} parent=0 // pred_fallthru
    _
  // Predicated region
  $region6: #{_drop_path_impl.1} parent=0 // pred_check
    _
  $region7: #{_drop_path_impl.1} parent=0 // pred_check_branch
    %10 = sbr.rel (0) target = $region9
  $region8: #{_drop_path_impl.1} parent=0 // pred_region
    _
  $region9: #{_drop_path_impl.1} parent=0 // pred_fallthru
    _
  %v11 = vld [vmem:[%s0] sm:$0xff]
  %v12 = vld [vmem:[%s0 + $0x8] sm:$0xff]
  %v13 = vld [vmem:[%s1] sm:$0xff]
  %15 = vset.pattern.permute.xlu0 0
  %16 = vperm.xlu0 %15, %v13
  %v17 = vpop.permute.xlu0 %16
  %v19 = vmul.f32 %v11, %v17
  %v20 = vmul.f32 %v12, %v17
  %21 = vst [vmem:[%s2] sm:$0xff] %v19
  %22 = vst [vmem:[%s2 + $0x8] sm:$0xff] %v20
  // Predicated region
  $region10: #{_drop_path_impl.1} parent=0 // pred_check
    _
  $region11: #{_drop_path_impl.1} parent=0 // pred_check_branch
    %24 = sbr.rel (0) target = $region13
  $region12: #{_drop_path_impl.1} parent=0 // pred_region
    _
  $region13: #{_drop_path_impl.1} parent=0 // pred_fallthru
    _
  // Predicated region
  $region14: #{_drop_path_impl.1} parent=0 // pred_check
    _
  $region15: #{_drop_path_impl.1} parent=0 // pred_check_branch
    %26 = sbr.rel (0) target = $region17
  $region16: #{_drop_path_impl.1} parent=0 // pred_region
    _
  $region17: #{_drop_path_impl.1} parent=0 // pred_fallthru
    _

</llo_original>
